<compile_context>
chip_gen: v5e
topology: v5e:2x2
jax: 0.10.0
libtpu: 0.0.40
codegen_flags: <defaults>
</compile_context>

<pallas_src>
import functools

import jax
import jax.numpy as jnp
from jax.experimental import pallas as pl
from jax.experimental.pallas import tpu as pltpu

_LANE = 128
_NEG_BIG = -1e30  # padded-logit bias; exp underflows to exactly 0 in softmax


def _round_up(x, m):
    return (x + m - 1) // m * m


def _mlp2_kernel(x_ref, w_ref, b_ref, out_ref, *, negative_slope: float):
    # (tm, n_mlp) @ (n_mlp, 128) -> (tm, 128), f32 accumulation on the MXU.
    logits = jnp.dot(x_ref[...], w_ref[...], preferred_element_type=jnp.float32)
    logits = logits + b_ref[...]                                 # pads -> -1e30
    y = jnp.where(logits >= 0, logits, negative_slope * logits)  # leaky_relu
    m = jnp.max(y, axis=-1, keepdims=True)                       # real cols dominate
    e = jnp.exp(y - m)                                           # padded cols -> 0
    s = jnp.sum(e, axis=-1, keepdims=True)
    out_ref[...] = (e / s).astype(out_ref.dtype)


def mlp2_forward(mlp_in, weight, bias, *, negative_slope=0.01, row_tile=256):
    """Pallas implementation of MLP_2.forward.

    mlp_in: [B, n_mlp] f32
    weight: [n_out, n_mlp] f32 (torch Linear layout), bias: [n_out] f32
    returns softmax(leaky_relu(mlp_in @ weight.T + bias), axis=1): [B, n_out]
    """
    b, n_mlp = mlp_in.shape
    n_out, n_in = weight.shape
    assert n_in == n_mlp
    assert bias.shape == (n_out,)

    # Lane-dense padded output width (multiple of 128).
    f_pad = _round_up(max(n_out, _LANE), _LANE)

    # Zero-pad weight columns; padded bias entries get a huge negative value
    # so exp(pad - max) underflows to exactly 0 in the softmax denominator.
    w_pad = jnp.zeros((n_mlp, f_pad), jnp.float32).at[:, :n_out].set(
        weight.T.astype(jnp.float32))
    b_pad = jnp.full((1, f_pad), _NEG_BIG, jnp.float32).at[0, :n_out].set(
        bias.astype(jnp.float32))

    # Row-tile the batch; pad the batch so the grid divides evenly.
    tm = min(row_tile, _round_up(b, 8))
    b_pad_rows = _round_up(b, tm)
    x = mlp_in.astype(jnp.float32)
    if b_pad_rows != b:
        x = jnp.pad(x, ((0, b_pad_rows - b), (0, 0)))

    grid = (b_pad_rows // tm,)
    kernel = functools.partial(_mlp2_kernel, negative_slope=negative_slope)

    cost = pl.CostEstimate(
        flops=2 * b_pad_rows * n_mlp * f_pad + 6 * b_pad_rows * f_pad,
        transcendentals=b_pad_rows * f_pad,
        bytes_accessed=4 * (b_pad_rows * n_mlp + n_mlp * f_pad + f_pad
                            + b_pad_rows * f_pad),
    )

    out_padded = pl.pallas_call(
        kernel,
        out_shape=jax.ShapeDtypeStruct((b_pad_rows, f_pad), jnp.float32),
        grid_spec=pltpu.PrefetchScalarGridSpec(
            num_scalar_prefetch=0,
            grid=grid,
            in_specs=[
                # x: one row tile per grid step
                pl.BlockSpec((tm, n_mlp), lambda i: (i, 0)),
                # padded weight / bias: full arrays, resident across steps
                pl.BlockSpec((n_mlp, f_pad), lambda i: (0, 0)),
                pl.BlockSpec((1, f_pad), lambda i: (0, 0)),
            ],
            out_specs=pl.BlockSpec((tm, f_pad), lambda i: (i, 0)),
        ),
        compiler_params=pltpu.CompilerParams(
            # Row tiles are fully independent -> parallel (dual-TC on v7x).
            dimension_semantics=("parallel",),
        ),
        cost_estimate=cost,
    )(x, w_pad, b_pad)

    # Slice away the padded rows / padded output columns.
    return out_padded[:b, :n_out]


if __name__ == "__main__":
    # Small shapes consistent with the module: batch=10, n_mlp=32, out=2.
    B, N_MLP, N_OUT = 10, 32, 2

    key = jax.random.PRNGKey(0)
    k_x, k_w, k_b = jax.random.split(key, 3)

    mlp_in = jax.random.normal(k_x, (B, N_MLP), dtype=jnp.float32)
    bound = 1.0 / (N_MLP ** 0.5)
    weight = jax.random.uniform(k_w, (N_OUT, N_MLP), jnp.float32,
                                minval=-bound, maxval=bound)
    bias = jax.random.uniform(k_b, (N_OUT,), jnp.float32,
                              minval=-bound, maxval=bound)

    # row_tile=8 so this small example exercises multiple grid steps and the
    # batch-padding path (B=10 -> padded to 16, grid=(2,)).
    out = mlp2_forward(mlp_in, weight, bias, row_tile=8)
    out = jax.block_until_ready(out)

    # Pure-JAX reference (same semantics as the PyTorch forward).
    logits = jnp.dot(mlp_in, weight.T, precision=jax.lax.Precision.HIGHEST) + bias
    y = jnp.where(logits >= 0, logits, 0.01 * logits)
    ref = jax.nn.softmax(y, axis=1)

    assert out.shape == (B, N_OUT)
    assert jnp.allclose(out, ref, atol=1e-4, rtol=1e-4), (
        float(jnp.max(jnp.abs(out - ref))))
    # Softmax rows must sum to 1.
    assert jnp.allclose(jnp.sum(out, axis=1), jnp.ones((B,)), atol=1e-5)

    print("KERNEL_OK")
</pallas_src>

<mosaic_0001>
module attributes {stable_mosaic.version = 11 : i64} {
  func.func @_mlp2_kernel(%arg0: i32, %arg1: memref<8x32xf32, #tpu.memory_space<vmem>>, %arg2: memref<32x128xf32, #tpu.memory_space<vmem>>, %arg3: memref<1x128xf32, #tpu.memory_space<vmem>>, %arg4: memref<8x128xf32, #tpu.memory_space<vmem>>) attributes {dimension_semantics = [#tpu.dimension_semantics<parallel>], iteration_bounds = array<i64: 2>, scalar_prefetch = 0 : i64, scratch_operands = 0 : i64, tpu.core_type = #tpu.core_type<tc>, window_params = [{transform_indices = @transform_0, window_bounds = array<i64: 8, 32>}, {pipeline_mode = #tpu.pipeline_mode<synchronous>, transform_indices = @transform_1, window_bounds = array<i64: 32, 128>}, {pipeline_mode = #tpu.pipeline_mode<synchronous>, transform_indices = @transform_2, window_bounds = array<i64: 1, 128>}, {transform_indices = @transform_3, window_bounds = array<i64: 8, 128>}]} {
    %c0 = arith.constant 0 : index
    %c0_0 = arith.constant 0 : index
    %0 = vector.load %arg1[%c0, %c0_0] : memref<8x32xf32, #tpu.memory_space<vmem>>, vector<8x32xf32>
    %c0_1 = arith.constant 0 : index
    %c0_2 = arith.constant 0 : index
    %1 = vector.load %arg2[%c0_1, %c0_2] : memref<32x128xf32, #tpu.memory_space<vmem>>, vector<32x128xf32>
    %cst = arith.constant dense<0.000000e+00> : vector<8x128xf32>
    %2 = tpu.matmul %0, %1, %cst {dimension_numbers = #tpu.dot_dimension_numbers<[1], [0], [0], [1], [0, 0, 1, 1], [], []>} : vector<8x32xf32>, vector<32x128xf32>, vector<8x128xf32> -> vector<8x128xf32>
    %c0_3 = arith.constant 0 : index
    %c0_4 = arith.constant 0 : index
    %3 = vector.load %arg3[%c0_3, %c0_4] : memref<1x128xf32, #tpu.memory_space<vmem>>, vector<1x128xf32>
    %4 = vector.broadcast %3 : vector<1x128xf32> to vector<8x128xf32>
    %5 = arith.addf %2, %4 : vector<8x128xf32>
    %cst_5 = arith.constant 0.000000e+00 : f32
    %6 = vector.broadcast %cst_5 : f32 to vector<8x128xf32>
    %7 = arith.cmpf oge, %5, %6 : vector<8x128xf32>
    %cst_6 = arith.constant 0.00999999977 : f32
    %8 = vector.broadcast %cst_6 : f32 to vector<8x128xf32>
    %9 = arith.mulf %8, %5 : vector<8x128xf32>
    %10 = arith.select %7, %5, %9 : vector<8x128xi1>, vector<8x128xf32>
    %cst_7 = arith.constant dense<0xFF800000> : vector<8xf32>
    %11 = vector.multi_reduction <maximumf>, %10, %cst_7 [1] : vector<8x128xf32> to vector<8xf32>
    %12 = vector.shape_cast %11 : vector<8xf32> to vector<8x1xf32>
    %13 = vector.broadcast %12 : vector<8x1xf32> to vector<8x128xf32>
    %14 = arith.subf %10, %13 : vector<8x128xf32>
    %15 = math.exp %14 : vector<8x128xf32>
    %cst_8 = arith.constant dense<0.000000e+00> : vector<8xf32>
    %16 = vector.multi_reduction <add>, %15, %cst_8 [1] : vector<8x128xf32> to vector<8xf32>
    %17 = vector.shape_cast %16 : vector<8xf32> to vector<8x1xf32>
    %18 = vector.broadcast %17 : vector<8x1xf32> to vector<8x128xf32>
    %19 = arith.divf %15, %18 : vector<8x128xf32>
    %c0_9 = arith.constant 0 : index
    %c0_10 = arith.constant 0 : index
    %20 = vector.load %arg4[%c0_9, %c0_10] : memref<8x128xf32, #tpu.memory_space<vmem>>, vector<8x128xf32>
    tpu.vector_store %arg4[%c0_9, %c0_10], %19 {strides = array<i32>} : memref<8x128xf32, #tpu.memory_space<vmem>>, vector<8x128xf32>,
    return
  }
  func.func @transform_0(%arg0: i32) -> (i32, i32) {
    %c0_i32 = arith.constant 0 : i32
    %c0_i32_0 = arith.constant 0 : i32
    return %arg0, %c0_i32 : i32, i32
  }
  func.func @transform_1(%arg0: i32) -> (i32, i32) {
    %c0_i32 = arith.constant 0 : i32
    %c0_i32_0 = arith.constant 0 : i32
    %c0_i32_1 = arith.constant 0 : i32
    return %c0_i32, %c0_i32_0 : i32, i32
  }
  func.func @transform_2(%arg0: i32) -> (i32, i32) {
    %c0_i32 = arith.constant 0 : i32
    %c0_i32_0 = arith.constant 0 : i32
    %c0_i32_1 = arith.constant 0 : i32
    return %c0_i32, %c0_i32_0 : i32, i32
  }
  func.func @transform_3(%arg0: i32) -> (i32, i32) {
    %c0_i32 = arith.constant 0 : i32
    %c0_i32_0 = arith.constant 0 : i32
    return %arg0, %c0_i32 : i32, i32
  }
}

</mosaic_0001>

<llo_original>
// kernel: tpu_custom_call.1
$region0: #{tpu_custom_call.1}
  #allocation0 [shape = 'u32[]', space=smem, size = 0x4, offset = 0x4, fixed_abs, tag = 'smem constant byte address 0x4 - core index']
  #allocation1 [shape = 'u32[72,128]{1,0:T(1,128)}', space=vmem, size = 0x9000, scoped, tag = 'internal scratch']
  %s0 = inlined_call_operand.hbm [shape: f32[16,32], index: 0, kind: input, shape index: {}]
  %s1 = inlined_call_operand.hbm [shape: f32[32,128], index: 1, kind: input, shape index: {}]
  %s2 = inlined_call_operand.vmem [shape: f32[1,128], index: 2, kind: input, shape index: {}]
  %s3 = inlined_call_operand.hbm [shape: f32[16,128], index: 3, kind: output, shape index: {}]
  %s4 = sld [smem:[#allocation0]]
  $region53: #{tpu_custom_call.1} parent=0
    _
  %s6 = ssub.s32 1, %s4
  %s7 = scalar_select 0, %s6, %s4
  $region1: #{tpu_custom_call.1} parent=0
    #allocation2 [shape = 'u8[8192]{0}', space=vmem, size = 0x2000, scoped, tag = 'input window, operand 0']
    #allocation3 [shape = 's32[2]{0}', space=sflag, size = 0x8, scoped, tag = 'scoped memory for tpu_custom_call.1']
    #allocation4 [shape = 's32[2]{0}', space=sflag, size = 0x8, scoped, tag = 'scoped memory for tpu_custom_call.1']
    #allocation5 [shape = 'u8[16384]{0}', space=vmem, size = 0x4000, scoped, tag = 'input window, operand 1, single buffered']
    #allocation6 [shape = 's32[1]{0}', space=sflag, size = 0x4, scoped, tag = 'scoped memory for tpu_custom_call.1']
    #allocation7 [shape = 'u8[8192]{0}', space=vmem, size = 0x2000, scoped, tag = 'output window, operand 0']
    %8 = vsyncpa [#allocation3], 0
    %s9 = scalar_lea.sflag [#allocation3], 1
    %10 = vsyncpa %s9, 0
    %11 = vsyncpa [#allocation6], 0
    %12 = vsyncpa [#allocation4], 0
    %s13 = scalar_lea.sflag [#allocation4], 1
    %14 = vsyncpa %s13, 0
    loop: start=0, step=1, limit=4
    $region2: #{tpu_custom_call.1} parent=1 // loop_pre_header
      _
    $region3: #{tpu_custom_call.1} parent=1 // loop_header
      %s16 = sphi 0, %s20
      %p17 = scmp.ge.s32.totalorder %s16, 4
      %s26 = sphi 0, %s28
      %s29 = sphi 0, %s26
      %s30 = sphi 0, %s29
      %s46 = sphi 0, %s30
      %s50 = sphi 0, %s50
      %s52 = sphi 0, %s50
      %s53 = sphi 0, %s52
      %s67 = sphi 0, %s53
      %s71 = sphi 0, %s71
      %s73 = sphi 0, %s71
      %s74 = sphi 0, %s73
      %s88 = sphi 0, %s74
      %s94 = sphi 0, %s96
      %s97 = sphi 0, %s94
      %s98 = sphi 0, %s97
      %s114 = sphi 0, %s98
    $region4: #{tpu_custom_call.1} parent=1 // loop_header_branch
      %19 = sbr.rel (%p17) target = $region8
    $region5: #{tpu_custom_call.1} parent=1 // loop_body
      %s21 = ssub.s32 %s16, 1
      %s22 = ssub.s32 %s16, 2
      %s23 = sadd.s32 %s16, 1
      %s24 = ssub.s32 %s16, %s23
      %p25 = scmp.eq.s32.totalorder %s24, 0
      %s27 = sadd.s32 %s26, 1
      %s28 = scalar_select %p25, %s26, %s27
      %p31 = pneg %p25
      %p32 = scmp.eq.s32.totalorder %s16, 1
      %p33 = por %p31, %p32
      %p34 = scmp.ne.s32.totalorder %s26, %s29
      %p35 = scmp.eq.s32.totalorder %s16, 0
      %p36 = por %p34, %p35
      %p37 = scmp.ne.s32.totalorder %s26, %s29
      %p38 = scmp.eq.s32.totalorder %s21, 1
      %p39 = por %p37, %p38
      %p40 = scmp.ne.s32.totalorder %s29, %s30
      %p41 = scmp.eq.s32.totalorder %s21, 0
      %p42 = por %p40, %p41
      %p43 = scmp.ne.s32.totalorder %s29, %s30
      %p44 = scmp.eq.s32.totalorder %s22, 1
      %p45 = por %p43, %p44
      %p47 = scmp.ne.s32.totalorder %s30, %s46
      %p48 = scmp.eq.s32.totalorder %s22, 0
      %p49 = por %p47, %p48
      %s51 = sadd.s32 %s50, 1
      %p54 = scmp.eq.s32.totalorder %s16, 1
      %p55 = scmp.ne.s32.totalorder %s50, %s52
      %p56 = scmp.eq.s32.totalorder %s16, 0
      %p57 = por %p55, %p56
      %p58 = scmp.ne.s32.totalorder %s50, %s52
      %p59 = scmp.eq.s32.totalorder %s21, 1
      %p60 = por %p58, %p59
      %p61 = scmp.ne.s32.totalorder %s52, %s53
      %p62 = scmp.eq.s32.totalorder %s21, 0
      %p63 = por %p61, %p62
      %p64 = scmp.ne.s32.totalorder %s52, %s53
      %p65 = scmp.eq.s32.totalorder %s22, 1
      %p66 = por %p64, %p65
      %p68 = scmp.ne.s32.totalorder %s53, %s67
      %p69 = scmp.eq.s32.totalorder %s22, 0
      %p70 = por %p68, %p69
      %s72 = sadd.s32 %s71, 1
      %p75 = scmp.eq.s32.totalorder %s16, 1
      %p76 = scmp.ne.s32.totalorder %s71, %s73
      %p77 = scmp.eq.s32.totalorder %s16, 0
      %p78 = por %p76, %p77
      %p79 = scmp.ne.s32.totalorder %s71, %s73
      %p80 = scmp.eq.s32.totalorder %s21, 1
      %p81 = por %p79, %p80
      %p82 = scmp.ne.s32.totalorder %s73, %s74
      %p83 = scmp.eq.s32.totalorder %s21, 0
      %p84 = por %p82, %p83
      %p85 = scmp.ne.s32.totalorder %s73, %s74
      %p86 = scmp.eq.s32.totalorder %s22, 1
      %p87 = por %p85, %p86
      %p89 = scmp.ne.s32.totalorder %s74, %s88
      %p90 = scmp.eq.s32.totalorder %s22, 0
      %p91 = por %p89, %p90
      %s92 = ssub.s32 %s16, %s23
      %p93 = scmp.eq.s32.totalorder %s92, 0
      %s95 = sadd.s32 %s94, 1
      %s96 = scalar_select %p93, %s94, %s95
      %p99 = pneg %p93
      %p100 = scmp.eq.s32.totalorder %s16, 1
      %p101 = por %p99, %p100
      %p102 = scmp.ne.s32.totalorder %s94, %s97
      %p103 = scmp.eq.s32.totalorder %s16, 0
      %p104 = por %p102, %p103
      %p105 = scmp.ne.s32.totalorder %s94, %s97
      %p106 = scmp.eq.s32.totalorder %s21, 1
      %p107 = por %p105, %p106
      %p108 = scmp.ne.s32.totalorder %s97, %s98
      %p109 = scmp.eq.s32.totalorder %s21, 0
      %p110 = por %p108, %p109
      %p111 = scmp.ne.s32.totalorder %s97, %s98
      %p112 = scmp.eq.s32.totalorder %s22, 1
      %p113 = por %p111, %p112
      %p115 = scmp.ne.s32.totalorder %s98, %s114
      %p116 = scmp.eq.s32.totalorder %s22, 0
      %p117 = por %p115, %p116
      %p118 = scmp.le.s32.totalorder 1, %s16
      %p119 = scmp.lt.s32.totalorder %s16, 3
      %p120 = pnand %p118, %p119
      %p121 = pneg %p120
      // Predicated region
      $region9: #{tpu_custom_call.1} parent=5 // pred_check
        _
      $region10: #{tpu_custom_call.1} parent=5 // pred_check_branch
        %123 = sbr.rel (%p120) target = $region12
      $region11: #{tpu_custom_call.1} parent=5 // pred_region
        %s124 = ssub.s32 %s16, 1
        // Predicated region
        $region13: #{tpu_custom_call.1} parent=11 // pred_check
          %p125 = pneg %p63
        $region14: #{tpu_custom_call.1} parent=11 // pred_check_branch
          %127 = sbr.rel (%p125) target = $region16
        $region15: #{tpu_custom_call.1} parent=11 // pred_region
          %129 = vsyncadd [#allocation6], 0
          %s130 = sshll.u32 %s1, 4
          %s131 = int_to_ptr.hbm [resolvable:$true] %s130
          %s132 = sshll.u32 [#allocation5], 4
          %s133 = int_to_ptr.vmem [resolvable:$true] %s132
          %138 = dma.hbm_to_vmem [thread:$0]  %s131, 512, %s133, [#allocation6], 128, 128, 8
        $region16: #{tpu_custom_call.1} parent=11 // pred_fallthru
          _
        // Predicated region
        $region17: #{tpu_custom_call.1} parent=11 // pred_check
          %p139 = pneg %p84
        $region18: #{tpu_custom_call.1} parent=11 // pred_check_branch
          %141 = sbr.rel (%p139) target = $region20
        $region19: #{tpu_custom_call.1} parent=11 // pred_region
          _
        $region20: #{tpu_custom_call.1} parent=11 // pred_fallthru
          _
      $region12: #{tpu_custom_call.1} parent=5 // pred_fallthru
        _
      %p142 = scmp.lt.s32.totalorder %s16, 2
      // Predicated region
      $region21: #{tpu_custom_call.1} parent=5 // pred_check
        %p143 = pneg %p142
      $region22: #{tpu_custom_call.1} parent=5 // pred_check_branch
        %145 = sbr.rel (%p143) target = $region24
      $region23: #{tpu_custom_call.1} parent=5 // pred_region
        // Predicated region
        $region25: #{tpu_custom_call.1} parent=23 // pred_check
          %p146 = pneg %p36
        $region26: #{tpu_custom_call.1} parent=23 // pred_check_branch
          %148 = sbr.rel (%p146) target = $region28
        $region27: #{tpu_custom_call.1} parent=23 // pred_region
          %s149 = sand.u32 %s26, 1
          %s150 = scalar_lea.sflag [#allocation3], %s149
          %s151 = sand.u32 %s26, 1
          %s152 = smul.addr %s151, 8
          %s153 = scalar_lea.vmem [#allocation2], %s152
          %155 = vsyncadd %s150, 0
          %s156 = smul.addr %s16, 8
          %s157 = scalar_lea.hbm %s0, %s156
          %s159 = sshll.u32 %s157, 4
          %s160 = int_to_ptr.hbm [resolvable:$true] %s159
          %s161 = sshll.u32 %s153, 4
          %s162 = int_to_ptr.vmem [resolvable:$true] %s161
          %164 = dma.hbm_to_vmem [thread:$0]  %s160, 128, %s162, %s150
        $region28: #{tpu_custom_call.1} parent=23 // pred_fallthru
          _
      $region24: #{tpu_custom_call.1} parent=5 // pred_fallthru
        _
      %p165 = scmp.le.s32.totalorder 1, %s16
      %p166 = scmp.lt.s32.totalorder %s16, 3
      %p167 = pnand %p165, %p166
      %p168 = pneg %p167
      // Predicated region
      $region29: #{tpu_custom_call.1} parent=5 // pred_check
        _
      $region30: #{tpu_custom_call.1} parent=5 // pred_check_branch
        %170 = sbr.rel (%p167) target = $region32
      $region31: #{tpu_custom_call.1} parent=5 // pred_region
        %s171 = ssub.s32 %s16, 1
        %s172 = sand.u32 %s29, 1
        %s173 = scalar_lea.sflag [#allocation3], %s172
        %s174 = sand.u32 %s29, 1
        %s175 = smul.addr %s174, 8
        %s176 = scalar_lea.vmem [#allocation2], %s175
        // Predicated region
        $region33: #{tpu_custom_call.1} parent=31 // pred_check
          %p177 = pneg %p42
        $region34: #{tpu_custom_call.1} parent=31 // pred_check_branch
          %179 = sbr.rel (%p177) target = $region36
        $region35: #{tpu_custom_call.1} parent=31 // pred_region
          %181 = dma.done %s173, 128
        $region36: #{tpu_custom_call.1} parent=31 // pred_fallthru
          _
        // Predicated region
        $region37: #{tpu_custom_call.1} parent=31 // pred_check
          %p182 = pneg %p63
        $region38: #{tpu_custom_call.1} parent=31 // pred_check_branch
          %184 = sbr.rel (%p182) target = $region40
        $region39: #{tpu_custom_call.1} parent=31 // pred_region
          %186 = dma.done [#allocation6], 512
        $region40: #{tpu_custom_call.1} parent=31 // pred_fallthru
          _
        %s187 = sand.u32 %s29, 1
        %s188 = scalar_lea.sflag [#allocation3], %s187
        %s189 = sand.u32 %s29, 1
        %s190 = smul.addr %s189, 8
        %s191 = scalar_lea.vmem [#allocation2], %s190
        %p192 = pneg %p42
        %p193 = pneg %p39
        %p194 = pneg %p63
        %p195 = pneg %p60
        %p196 = pneg %p84
        %p197 = pneg %p81
        %p198 = pneg %p110
        %p199 = pneg %p107
        %s200 = sand.u32 %s97, 1
        %s201 = scalar_lea.sflag [#allocation4], %s200
        %s202 = sand.u32 %s97, 1
        %s203 = smul.addr %s202, 8
        %s204 = scalar_lea.vmem [#allocation7], %s203
        %v205 = vld [vmem:[%s176] sm:$0xff]
        %v206 = vld [vmem:[#allocation5] sm:$0xff]
        %v207 = vld [vmem:[#allocation5 + $0x8] sm:$0xff]
        %v208 = vld [vmem:[#allocation5 + $0x10] sm:$0xff]
        %v209 = vld [vmem:[#allocation5 + $0x18] sm:$0xff]
        %v210 = vld [vmem:[%s2] sm:$0x1]
        %v212 = vperm.slane %v210, 0
        %vm214 = vcmask 261120
        %v216 = vsel %vm214, %v205, 0
        %218 = vmatpush.msra.mxu0 0.0
        %219 = vmatpush.msra.mxu0 0.0
        %220 = vmatpush.msra.mxu0 0.0
        %221 = vmatpush.msra.mxu0 0.0
        %222 = vmatpush.msra.mxu0 0.0
        %223 = vmatpush.msra.mxu0 0.0
        %224 = vmatpush.msra.mxu0 0.0
        %225 = vmatpush.msra.mxu0 0.0
        %226 = vmatpush.msra.mxu0 0.0
        %227 = vmatpush.msra.mxu0 0.0
        %228 = vmatpush.msra.mxu0 0.0
        %229 = vmatpush.msra.mxu0 0.0
        %230 = vmatpush.msra.mxu0 %v209
        %231 = vmatpush.msra.mxu0 %v208
        %232 = vmatpush.msra.mxu0 %v207
        %233 = vmatpush.msra.mxu0 %v206
        %234 = vmatmul.f32.gmra.mxu0 %v216
        %v235 = vpop.f32.mrf.mxu0
        %v236 = vadd.f32 %v212, %v235
        %237 = vdwg.mxu0
        %vm238 = vcmp.ge.f32.partialorder %v236, 0.0
        %v239 = vmul.f32 %v236, 0.01
        %v240 = vsel %vm238, %v236, %v239
        %241 = vmax.xlane.f32.xlu0 %v240
        %v242 = vpop.xlane.xlu0 %241
        %v243 = vsub.f32 %v240, %v242
        %v244 = vmul.f32 %v243, 1.442695
        %v245 = vpow.pop %v244
        %246 = vadd.xlane.f32.xlu0 %v245
        %v247 = vpop.xlane.xlu0 %246
        %v248 = vrcp.pop %v247
        %v249 = vmul.f32 %v247, %v248
        %v250 = vsub.f32 1.0, %v249
        %v251 = vmul.f32 %v248, %v250
        %v252 = vadd.f32 %v248, %v251
        %vm253 = vweird.f32 %v247
        %vm254 = vweird.f32 %v248
        %vm255 = vmor %vm253, %vm254
        %v256 = vsel %vm255, %v248, %v252
        %v257 = vand.u32 2147483647, %v247
        %vm258 = vcmp.eq.f32.partialorder %v257, 8.507059e+37
        %v259 = vand.u32 %v247, 2147483648
        %v260 = vor.u32 1.1754944e-38, %v259
        %v261 = vsel %vm258, %v260, %v256
        %v262 = vmul.f32 %v245, %v261
        %263 = vst [vmem:[%s204] sm:$0xff] %v262
        %s264 = sand.u32 %s97, 1
        %s265 = scalar_lea.sflag [#allocation4], %s264
        %s266 = sand.u32 %s97, 1
        %s267 = smul.addr %s266, 8
        %s268 = scalar_lea.vmem [#allocation7], %s267
        // Predicated region
        $region41: #{tpu_custom_call.1} parent=31 // pred_check
          %p269 = pneg %p107
        $region42: #{tpu_custom_call.1} parent=31 // pred_check_branch
          %271 = sbr.rel (%p269) target = $region44
        $region43: #{tpu_custom_call.1} parent=31 // pred_region
          %273 = vsyncadd %s265, 0
          %s274 = smul.addr %s21, 8
          %s275 = scalar_lea.hbm %s3, %s274
          %s277 = sshll.u32 %s268, 4
          %s278 = int_to_ptr.vmem [resolvable:$true] %s277
          %s279 = sshll.u32 %s275, 4
          %s280 = int_to_ptr.hbm [resolvable:$true] %s279
          %282 = dma.vmem_to_hbm [thread:$0]  %s278, 128, %s280, %s265
        $region44: #{tpu_custom_call.1} parent=31 // pred_fallthru
          _
      $region32: #{tpu_custom_call.1} parent=5 // pred_fallthru
        _
      %p283 = scmp.le.s32.totalorder 2, %s16
      // Predicated region
      $region45: #{tpu_custom_call.1} parent=5 // pred_check
        %p284 = pneg %p283
      $region46: #{tpu_custom_call.1} parent=5 // pred_check_branch
        %286 = sbr.rel (%p284) target = $region48
      $region47: #{tpu_custom_call.1} parent=5 // pred_region
        %s287 = ssub.s32 %s16, 2
        // Predicated region
        $region49: #{tpu_custom_call.1} parent=47 // pred_check
          %p288 = pneg %p113
        $region50: #{tpu_custom_call.1} parent=47 // pred_check_branch
          %290 = sbr.rel (%p288) target = $region52
        $region51: #{tpu_custom_call.1} parent=47 // pred_region
          %s291 = sand.u32 %s98, 1
          %s292 = scalar_lea.sflag [#allocation4], %s291
          %s293 = sand.u32 %s98, 1
          %s294 = smul.addr %s293, 8
          %s295 = scalar_lea.vmem [#allocation7], %s294
          %297 = dma.done %s292, 128
        $region52: #{tpu_custom_call.1} parent=47 // pred_fallthru
          _
      $region48: #{tpu_custom_call.1} parent=5 // pred_fallthru
        _
    $region6: #{tpu_custom_call.1} parent=1 // loop_footer
      %s20 = sadd.s32 1, %s16
    $region7: #{tpu_custom_call.1} parent=1 // loop_footer_branch
      %15 = sbr.rel target = $region3
    $region8: #{tpu_custom_call.1} parent=1 // loop_exit
      _
    %298 = vsyncpa [#allocation3], 1
    %s299 = scalar_lea.sflag [#allocation3], 1
    %300 = vsyncpa %s299, 1
    %301 = vsyncpa [#allocation6], 1
    %302 = vsyncpa [#allocation4], 1
    %s303 = scalar_lea.sflag [#allocation4], 1
    %304 = vsyncpa %s303, 1

</llo_original>
